<compile_context>
chip_gen: v6e
topology: v6e:2x2x1
jax: 0.10.0
libtpu: 0.0.40
codegen_flags: <defaults>
</compile_context>

<pallas_src>
import math

import jax
import jax.numpy as jnp
from jax.experimental import pallas as pl
from jax.experimental.pallas import tpu as pltpu

D_PAD = 128      # all feature dims zero-padded to one full lane width
N_LAYERS = 7     # e0, e1, fc_mu, fc_var, d0, d1, d2
N_OUT = 4        # x_recon, z, mu, logvar
MAX_TB = 256     # batch tile when batch is large (halve on v7x if VMEM-tight)


def _layer_dims(input_dim, latent_dim, hidden_dims):
    return [
        (input_dim, hidden_dims[0]),       # encoder.0
        (hidden_dims[0], hidden_dims[1]),  # encoder.2
        (hidden_dims[1], latent_dim),      # fc_mu
        (hidden_dims[1], latent_dim),      # fc_var
        (latent_dim, hidden_dims[1]),      # decoder.0
        (hidden_dims[1], hidden_dims[0]),  # decoder.2
        (hidden_dims[0], input_dim),       # decoder.4
    ]


# ---------------------------------------------------------------------------
# Fused kernel: full BetaVAE forward on one (TB, 128) batch tile
# ---------------------------------------------------------------------------
def beta_vae_kernel(xe_ref, w_ref, b_ref, out_ref):
    # xe_ref : (2, TB, 128) f32   [0] = x (zero padded), [1] = eps (zero padded)
    # w_ref  : (7, 128, 128) bf16 zero-padded [in, out] weights
    # b_ref  : (8, 128) f32       zero-padded biases, row i = layer i
    # out_ref: (4, TB, 128) f32   [0]=x_recon [1]=z [2]=mu [3]=logvar
    x = xe_ref[0, :, :]
    eps = xe_ref[1, :, :]

    def dense(h, i, relu):
        # bf16 operands on the MXU, f32 accumulation + f32 elementwise.
        acc = jnp.dot(h.astype(jnp.bfloat16), w_ref[i, :, :],
                      preferred_element_type=jnp.float32)
        acc = acc + b_ref[pl.ds(i, 1), :]
        if relu:
            acc = jnp.maximum(acc, 0.0)
        return acc

    # ----- encoder: Linear+ReLU, Linear+ReLU (dropout=0 -> identity) -------
    h = dense(x, 0, True)
    h = dense(h, 1, True)

    # ----- latent heads: two separate dots (no in-vreg lane slicing) -------
    mu = dense(h, 2, False)
    logvar = dense(h, 3, False)

    # ----- reparametrization: z = mu + eps * exp(0.5*logvar), all f32 ------
    # (padded lanes: mu = 0, eps = 0  =>  z padded lanes stay 0)
    z = mu + eps * jnp.exp(0.5 * logvar)

    # ----- decoder: Linear+ReLU, Linear+ReLU, Linear ------------------------
    d = dense(z, 4, True)
    d = dense(d, 5, True)
    xrec = dense(d, 6, False)

    # ----- single lane-dense packed output (all full 128-lane stores) ------
    out_ref[0, :, :] = xrec
    out_ref[1, :, :] = z
    out_ref[2, :, :] = mu
    out_ref[3, :, :] = logvar


# ---------------------------------------------------------------------------
# Wrapper: one pallas_call, batch-tiled 1-D "parallel" grid
# ---------------------------------------------------------------------------
def beta_vae_forward(x, eps, params, *, latent_dim):
    B, input_dim = x.shape
    assert input_dim <= D_PAD and latent_dim <= D_PAD

    # Pad batch to a sublane multiple; tile it once it gets big.
    if B <= MAX_TB:
        tb = max(8, -(-B // 8) * 8)
        b_pad = tb
    else:
        tb = MAX_TB
        b_pad = -(-B // tb) * tb
    grid = (b_pad // tb,)

    # Pack x and eps into one zero-padded slab -> a single input DMA.
    xe = jnp.zeros((2, b_pad, D_PAD), jnp.float32)
    xe = xe.at[0, :B, :input_dim].set(x.astype(jnp.float32))
    xe = xe.at[1, :B, :latent_dim].set(eps.astype(jnp.float32))

    out = pl.pallas_call(
        beta_vae_kernel,
        out_shape=jax.ShapeDtypeStruct((N_OUT, b_pad, D_PAD), jnp.float32),
        grid=grid,
        in_specs=[
            pl.BlockSpec((2, tb, D_PAD), lambda i: (0, i, 0)),          # x|eps
            pl.BlockSpec((N_LAYERS, D_PAD, D_PAD), lambda i: (0, 0, 0)),  # W slab (resident)
            pl.BlockSpec((8, D_PAD), lambda i: (0, 0)),                  # b slab (resident)
        ],
        out_specs=pl.BlockSpec((N_OUT, tb, D_PAD), lambda i: (0, i, 0)),
        compiler_params=pltpu.CompilerParams(
            dimension_semantics=("parallel",)),
    )(xe, params["w_slab"], params["b_slab"])

    x_recon = out[0, :B, :input_dim]
    z = out[1, :B, :latent_dim]
    mu = out[2, :B, :latent_dim]
    logvar = out[3, :B, :latent_dim]
    return x_recon, z, mu, logvar


# ---------------------------------------------------------------------------
# Parameter init (torch nn.Linear-style uniform), packed into padded slabs
# ---------------------------------------------------------------------------
def init_params(key, input_dim, latent_dim, hidden_dims):
    layer_dims = _layer_dims(input_dim, latent_dim, hidden_dims)
    keys = jax.random.split(key, len(layer_dims))
    w_slab = jnp.zeros((N_LAYERS, D_PAD, D_PAD), jnp.float32)
    b_slab = jnp.zeros((8, D_PAD), jnp.float32)
    for i, ((fi, fo), k) in enumerate(zip(layer_dims, keys)):
        kw, kb = jax.random.split(k)
        bound = 1.0 / math.sqrt(fi)
        w = jax.random.uniform(kw, (fi, fo), jnp.float32, -bound, bound)
        b = jax.random.uniform(kb, (fo,), jnp.float32, -bound, bound)
        w_slab = w_slab.at[i, :fi, :fo].set(w)
        b_slab = b_slab.at[i, :fo].set(b)
    # Weights stored bf16 (MXU-native on v6e/v7x, halves weight DMA bytes);
    # biases stay f32 (elementwise path stays f32 on every generation).
    return dict(w_slab=w_slab.astype(jnp.bfloat16), b_slab=b_slab)


# ---------------------------------------------------------------------------
# Pure-JAX reference with the same bf16-operand / f32-accum semantics
# ---------------------------------------------------------------------------
def beta_vae_reference(x, eps, params, layer_dims):
    w = params["w_slab"]
    b = params["b_slab"]

    def dense(h, i, relu):
        fi, fo = layer_dims[i]
        y = jnp.dot(h.astype(jnp.bfloat16), w[i, :fi, :fo],
                    preferred_element_type=jnp.float32) + b[i, :fo]
        return jnp.maximum(y, 0.0) if relu else y

    h = dense(x, 0, True)
    h = dense(h, 1, True)
    mu = dense(h, 2, False)
    logvar = dense(h, 3, False)
    z = mu + eps * jnp.exp(0.5 * logvar)
    d = dense(z, 4, True)
    d = dense(d, 5, True)
    xrec = dense(d, 6, False)
    return xrec, z, mu, logvar


if __name__ == "__main__":
    # Shapes consistent with the module: input_dim=32, latent_dim=8,
    # hidden_dims=[64, 32], dropout=0.0, batch=2.
    batch = 2
    input_dim = 32
    latent_dim = 8
    hidden_dims = [64, 32]

    key = jax.random.PRNGKey(0)
    kx, keps, kp = jax.random.split(key, 3)
    x = jax.random.normal(kx, (batch, input_dim), jnp.float32)
    eps = jax.random.normal(keps, (batch, latent_dim), jnp.float32)
    params = init_params(kp, input_dim, latent_dim, hidden_dims)

    x_recon, z, mu, logvar = beta_vae_forward(x, eps, params,
                                              latent_dim=latent_dim)
    x_recon, z, mu, logvar = jax.block_until_ready((x_recon, z, mu, logvar))

    assert x_recon.shape == (batch, input_dim)
    assert z.shape == (batch, latent_dim)
    assert mu.shape == (batch, latent_dim)
    assert logvar.shape == (batch, latent_dim)
    for a in (x_recon, z, mu, logvar):
        assert bool(jnp.all(jnp.isfinite(a)))

    # Numerical check against the pure-JAX reference (same bf16 MXU operands).
    ldims = _layer_dims(input_dim, latent_dim, hidden_dims)
    r_xrec, r_z, r_mu, r_logvar = beta_vae_reference(x, eps, params, ldims)
    for got, ref in ((x_recon, r_xrec), (z, r_z), (mu, r_mu), (logvar, r_logvar)):
        assert bool(jnp.allclose(got, ref, atol=5e-2, rtol=5e-2)), \
            float(jnp.max(jnp.abs(got - ref)))

    print("KERNEL_OK")
</pallas_src>

<mosaic_0001>
module attributes {stable_mosaic.version = 11 : i64} {
  func.func @beta_vae_kernel(%arg0: i32, %arg1: memref<2x8x128xf32, #tpu.memory_space<vmem>>, %arg2: memref<7x128x128xbf16, #tpu.memory_space<vmem>>, %arg3: memref<8x128xf32, #tpu.memory_space<vmem>>, %arg4: memref<4x8x128xf32, #tpu.memory_space<vmem>>) attributes {dimension_semantics = [#tpu.dimension_semantics<parallel>], iteration_bounds = array<i64: 1>, scalar_prefetch = 0 : i64, scratch_operands = 0 : i64, tpu.core_type = #tpu.core_type<tc>, window_params = [{transform_indices = @transform_0, window_bounds = array<i64: 2, 8, 128>}, {pipeline_mode = #tpu.pipeline_mode<synchronous>, transform_indices = @transform_1, window_bounds = array<i64: 7, 128, 128>}, {pipeline_mode = #tpu.pipeline_mode<synchronous>, transform_indices = @transform_2, window_bounds = array<i64: 8, 128>}, {transform_indices = @transform_3, window_bounds = array<i64: 4, 8, 128>}]} {
    %c0 = arith.constant 0 : index
    %c0_0 = arith.constant 0 : index
    %c0_1 = arith.constant 0 : index
    %0 = vector.load %arg1[%c0, %c0_0, %c0_1] : memref<2x8x128xf32, #tpu.memory_space<vmem>>, vector<1x8x128xf32>
    %1 = vector.shape_cast %0 : vector<1x8x128xf32> to vector<8x128xf32>
    %c1 = arith.constant 1 : index
    %c0_2 = arith.constant 0 : index
    %c0_3 = arith.constant 0 : index
    %2 = vector.load %arg1[%c1, %c0_2, %c0_3] : memref<2x8x128xf32, #tpu.memory_space<vmem>>, vector<1x8x128xf32>
    %3 = vector.shape_cast %2 : vector<1x8x128xf32> to vector<8x128xf32>
    %4 = arith.truncf %1 : vector<8x128xf32> to vector<8x128xbf16>
    %c0_4 = arith.constant 0 : index
    %c0_5 = arith.constant 0 : index
    %c0_6 = arith.constant 0 : index
    %5 = vector.load %arg2[%c0_4, %c0_5, %c0_6] : memref<7x128x128xbf16, #tpu.memory_space<vmem>>, vector<1x128x128xbf16>
    %6 = vector.shape_cast %5 : vector<1x128x128xbf16> to vector<128x128xbf16>
    %cst = arith.constant dense<0.000000e+00> : vector<8x128xf32>
    %7 = tpu.matmul %4, %6, %cst {dimension_numbers = #tpu.dot_dimension_numbers<[1], [0], [0], [1], [0, 0, 1, 1], [], []>} : vector<8x128xbf16>, vector<128x128xbf16>, vector<8x128xf32> -> vector<8x128xf32>
    %c0_7 = arith.constant 0 : index
    %c0_8 = arith.constant 0 : index
    %8 = vector.load %arg3[%c0_7, %c0_8] : memref<8x128xf32, #tpu.memory_space<vmem>>, vector<1x128xf32>
    %9 = vector.broadcast %8 : vector<1x128xf32> to vector<8x128xf32>
    %10 = arith.addf %7, %9 : vector<8x128xf32>
    %cst_9 = arith.constant 0.000000e+00 : f32
    %11 = vector.broadcast %cst_9 : f32 to vector<8x128xf32>
    %12 = arith.maximumf %10, %11 : vector<8x128xf32>
    %13 = arith.truncf %12 : vector<8x128xf32> to vector<8x128xbf16>
    %c1_10 = arith.constant 1 : index
    %c0_11 = arith.constant 0 : index
    %c0_12 = arith.constant 0 : index
    %14 = vector.load %arg2[%c1_10, %c0_11, %c0_12] : memref<7x128x128xbf16, #tpu.memory_space<vmem>>, vector<1x128x128xbf16>
    %15 = vector.shape_cast %14 : vector<1x128x128xbf16> to vector<128x128xbf16>
    %cst_13 = arith.constant dense<0.000000e+00> : vector<8x128xf32>
    %16 = tpu.matmul %13, %15, %cst_13 {dimension_numbers = #tpu.dot_dimension_numbers<[1], [0], [0], [1], [0, 0, 1, 1], [], []>} : vector<8x128xbf16>, vector<128x128xbf16>, vector<8x128xf32> -> vector<8x128xf32>
    %c1_14 = arith.constant 1 : index
    %c0_15 = arith.constant 0 : index
    %17 = vector.load %arg3[%c1_14, %c0_15] : memref<8x128xf32, #tpu.memory_space<vmem>>, vector<1x128xf32>
    %18 = vector.broadcast %17 : vector<1x128xf32> to vector<8x128xf32>
    %19 = arith.addf %16, %18 : vector<8x128xf32>
    %cst_16 = arith.constant 0.000000e+00 : f32
    %20 = vector.broadcast %cst_16 : f32 to vector<8x128xf32>
    %21 = arith.maximumf %19, %20 : vector<8x128xf32>
    %22 = arith.truncf %21 : vector<8x128xf32> to vector<8x128xbf16>
    %c2 = arith.constant 2 : index
    %c0_17 = arith.constant 0 : index
    %c0_18 = arith.constant 0 : index
    %23 = vector.load %arg2[%c2, %c0_17, %c0_18] : memref<7x128x128xbf16, #tpu.memory_space<vmem>>, vector<1x128x128xbf16>
    %24 = vector.shape_cast %23 : vector<1x128x128xbf16> to vector<128x128xbf16>
    %cst_19 = arith.constant dense<0.000000e+00> : vector<8x128xf32>
    %25 = tpu.matmul %22, %24, %cst_19 {dimension_numbers = #tpu.dot_dimension_numbers<[1], [0], [0], [1], [0, 0, 1, 1], [], []>} : vector<8x128xbf16>, vector<128x128xbf16>, vector<8x128xf32> -> vector<8x128xf32>
    %c2_20 = arith.constant 2 : index
    %c0_21 = arith.constant 0 : index
    %26 = vector.load %arg3[%c2_20, %c0_21] : memref<8x128xf32, #tpu.memory_space<vmem>>, vector<1x128xf32>
    %27 = vector.broadcast %26 : vector<1x128xf32> to vector<8x128xf32>
    %28 = arith.addf %25, %27 : vector<8x128xf32>
    %29 = arith.truncf %21 : vector<8x128xf32> to vector<8x128xbf16>
    %c3 = arith.constant 3 : index
    %c0_22 = arith.constant 0 : index
    %c0_23 = arith.constant 0 : index
    %30 = vector.load %arg2[%c3, %c0_22, %c0_23] : memref<7x128x128xbf16, #tpu.memory_space<vmem>>, vector<1x128x128xbf16>
    %31 = vector.shape_cast %30 : vector<1x128x128xbf16> to vector<128x128xbf16>
    %cst_24 = arith.constant dense<0.000000e+00> : vector<8x128xf32>
    %32 = tpu.matmul %29, %31, %cst_24 {dimension_numbers = #tpu.dot_dimension_numbers<[1], [0], [0], [1], [0, 0, 1, 1], [], []>} : vector<8x128xbf16>, vector<128x128xbf16>, vector<8x128xf32> -> vector<8x128xf32>
    %c3_25 = arith.constant 3 : index
    %c0_26 = arith.constant 0 : index
    %33 = vector.load %arg3[%c3_25, %c0_26] : memref<8x128xf32, #tpu.memory_space<vmem>>, vector<1x128xf32>
    %34 = vector.broadcast %33 : vector<1x128xf32> to vector<8x128xf32>
    %35 = arith.addf %32, %34 : vector<8x128xf32>
    %cst_27 = arith.constant 5.000000e-01 : f32
    %36 = vector.broadcast %cst_27 : f32 to vector<8x128xf32>
    %37 = arith.mulf %36, %35 : vector<8x128xf32>
    %38 = math.exp %37 : vector<8x128xf32>
    %39 = arith.mulf %3, %38 : vector<8x128xf32>
    %40 = arith.addf %28, %39 : vector<8x128xf32>
    %41 = arith.truncf %40 : vector<8x128xf32> to vector<8x128xbf16>
    %c4 = arith.constant 4 : index
    %c0_28 = arith.constant 0 : index
    %c0_29 = arith.constant 0 : index
    %42 = vector.load %arg2[%c4, %c0_28, %c0_29] : memref<7x128x128xbf16, #tpu.memory_space<vmem>>, vector<1x128x128xbf16>
    %43 = vector.shape_cast %42 : vector<1x128x128xbf16> to vector<128x128xbf16>
    %cst_30 = arith.constant dense<0.000000e+00> : vector<8x128xf32>
    %44 = tpu.matmul %41, %43, %cst_30 {dimension_numbers = #tpu.dot_dimension_numbers<[1], [0], [0], [1], [0, 0, 1, 1], [], []>} : vector<8x128xbf16>, vector<128x128xbf16>, vector<8x128xf32> -> vector<8x128xf32>
    %c4_31 = arith.constant 4 : index
    %c0_32 = arith.constant 0 : index
    %45 = vector.load %arg3[%c4_31, %c0_32] : memref<8x128xf32, #tpu.memory_space<vmem>>, vector<1x128xf32>
    %46 = vector.broadcast %45 : vector<1x128xf32> to vector<8x128xf32>
    %47 = arith.addf %44, %46 : vector<8x128xf32>
    %cst_33 = arith.constant 0.000000e+00 : f32
    %48 = vector.broadcast %cst_33 : f32 to vector<8x128xf32>
    %49 = arith.maximumf %47, %48 : vector<8x128xf32>
    %50 = arith.truncf %49 : vector<8x128xf32> to vector<8x128xbf16>
    %c5 = arith.constant 5 : index
    %c0_34 = arith.constant 0 : index
    %c0_35 = arith.constant 0 : index
    %51 = vector.load %arg2[%c5, %c0_34, %c0_35] : memref<7x128x128xbf16, #tpu.memory_space<vmem>>, vector<1x128x128xbf16>
    %52 = vector.shape_cast %51 : vector<1x128x128xbf16> to vector<128x128xbf16>
    %cst_36 = arith.constant dense<0.000000e+00> : vector<8x128xf32>
    %53 = tpu.matmul %50, %52, %cst_36 {dimension_numbers = #tpu.dot_dimension_numbers<[1], [0], [0], [1], [0, 0, 1, 1], [], []>} : vector<8x128xbf16>, vector<128x128xbf16>, vector<8x128xf32> -> vector<8x128xf32>
    %c5_37 = arith.constant 5 : index
    %c0_38 = arith.constant 0 : index
    %54 = vector.load %arg3[%c5_37, %c0_38] : memref<8x128xf32, #tpu.memory_space<vmem>>, vector<1x128xf32>
    %55 = vector.broadcast %54 : vector<1x128xf32> to vector<8x128xf32>
    %56 = arith.addf %53, %55 : vector<8x128xf32>
    %cst_39 = arith.constant 0.000000e+00 : f32
    %57 = vector.broadcast %cst_39 : f32 to vector<8x128xf32>
    %58 = arith.maximumf %56, %57 : vector<8x128xf32>
    %59 = arith.truncf %58 : vector<8x128xf32> to vector<8x128xbf16>
    %c6 = arith.constant 6 : index
    %c0_40 = arith.constant 0 : index
    %c0_41 = arith.constant 0 : index
    %60 = vector.load %arg2[%c6, %c0_40, %c0_41] : memref<7x128x128xbf16, #tpu.memory_space<vmem>>, vector<1x128x128xbf16>
    %61 = vector.shape_cast %60 : vector<1x128x128xbf16> to vector<128x128xbf16>
    %cst_42 = arith.constant dense<0.000000e+00> : vector<8x128xf32>
    %62 = tpu.matmul %59, %61, %cst_42 {dimension_numbers = #tpu.dot_dimension_numbers<[1], [0], [0], [1], [0, 0, 1, 1], [], []>} : vector<8x128xbf16>, vector<128x128xbf16>, vector<8x128xf32> -> vector<8x128xf32>
    %c6_43 = arith.constant 6 : index
    %c0_44 = arith.constant 0 : index
    %63 = vector.load %arg3[%c6_43, %c0_44] : memref<8x128xf32, #tpu.memory_space<vmem>>, vector<1x128xf32>
    %64 = vector.broadcast %63 : vector<1x128xf32> to vector<8x128xf32>
    %65 = arith.addf %62, %64 : vector<8x128xf32>
    %c0_45 = arith.constant 0 : index
    %c0_46 = arith.constant 0 : index
    %c0_47 = arith.constant 0 : index
    %66 = vector.load %arg4[%c0_45, %c0_46, %c0_47] : memref<4x8x128xf32, #tpu.memory_space<vmem>>, vector<1x8x128xf32>
    %67 = vector.shape_cast %66 : vector<1x8x128xf32> to vector<8x128xf32>
    %68 = vector.shape_cast %65 : vector<8x128xf32> to vector<1x8x128xf32>
    tpu.vector_store %arg4[%c0_45, %c0_46, %c0_47], %68 {strides = array<i32>} : memref<4x8x128xf32, #tpu.memory_space<vmem>>, vector<1x8x128xf32>,
    %c1_48 = arith.constant 1 : index
    %c0_49 = arith.constant 0 : index
    %c0_50 = arith.constant 0 : index
    %69 = vector.load %arg4[%c1_48, %c0_49, %c0_50] : memref<4x8x128xf32, #tpu.memory_space<vmem>>, vector<1x8x128xf32>
    %70 = vector.shape_cast %69 : vector<1x8x128xf32> to vector<8x128xf32>
    %71 = vector.shape_cast %40 : vector<8x128xf32> to vector<1x8x128xf32>
    tpu.vector_store %arg4[%c1_48, %c0_49, %c0_50], %71 {strides = array<i32>} : memref<4x8x128xf32, #tpu.memory_space<vmem>>, vector<1x8x128xf32>,
    %c2_51 = arith.constant 2 : index
    %c0_52 = arith.constant 0 : index
    %c0_53 = arith.constant 0 : index
    %72 = vector.load %arg4[%c2_51, %c0_52, %c0_53] : memref<4x8x128xf32, #tpu.memory_space<vmem>>, vector<1x8x128xf32>
    %73 = vector.shape_cast %72 : vector<1x8x128xf32> to vector<8x128xf32>
    %74 = vector.shape_cast %28 : vector<8x128xf32> to vector<1x8x128xf32>
    tpu.vector_store %arg4[%c2_51, %c0_52, %c0_53], %74 {strides = array<i32>} : memref<4x8x128xf32, #tpu.memory_space<vmem>>, vector<1x8x128xf32>,
    %c3_54 = arith.constant 3 : index
    %c0_55 = arith.constant 0 : index
    %c0_56 = arith.constant 0 : index
    %75 = vector.load %arg4[%c3_54, %c0_55, %c0_56] : memref<4x8x128xf32, #tpu.memory_space<vmem>>, vector<1x8x128xf32>
    %76 = vector.shape_cast %75 : vector<1x8x128xf32> to vector<8x128xf32>
    %77 = vector.shape_cast %35 : vector<8x128xf32> to vector<1x8x128xf32>
    tpu.vector_store %arg4[%c3_54, %c0_55, %c0_56], %77 {strides = array<i32>} : memref<4x8x128xf32, #tpu.memory_space<vmem>>, vector<1x8x128xf32>,
    return
  }
  func.func @transform_0(%arg0: i32) -> (i32, i32, i32) {
    %c0_i32 = arith.constant 0 : i32
    %c0_i32_0 = arith.constant 0 : i32
    %c0_i32_1 = arith.constant 0 : i32
    return %c0_i32, %arg0, %c0_i32_0 : i32, i32, i32
  }
  func.func @transform_1(%arg0: i32) -> (i32, i32, i32) {
    %c0_i32 = arith.constant 0 : i32
    %c0_i32_0 = arith.constant 0 : i32
    %c0_i32_1 = arith.constant 0 : i32
    %c0_i32_2 = arith.constant 0 : i32
    return %c0_i32, %c0_i32_0, %c0_i32_1 : i32, i32, i32
  }
  func.func @transform_2(%arg0: i32) -> (i32, i32) {
    %c0_i32 = arith.constant 0 : i32
    %c0_i32_0 = arith.constant 0 : i32
    %c0_i32_1 = arith.constant 0 : i32
    return %c0_i32, %c0_i32_0 : i32, i32
  }
  func.func @transform_3(%arg0: i32) -> (i32, i32, i32) {
    %c0_i32 = arith.constant 0 : i32
    %c0_i32_0 = arith.constant 0 : i32
    %c0_i32_1 = arith.constant 0 : i32
    return %c0_i32, %arg0, %c0_i32_0 : i32, i32, i32
  }
}

</mosaic_0001>

<llo_original>
// kernel: tpu_custom_call.1
$region0: #{tpu_custom_call.1}
  #allocation0 [shape = 'u32[]', space=smem, size = 0x4, offset = 0x4, fixed_abs, tag = 'smem constant byte address 0x4 - core index']
  #allocation1 [shape = 'u32[144,128]{1,0:T(1,128)}', space=vmem, size = 0x12000, scoped, tag = 'internal scratch']
  %s0 = inlined_call_operand.hbm [shape: f32[2,8,128], index: 0, kind: input, shape index: {}]
  %s1 = inlined_call_operand.hbm [shape: bf16[7,128,128], index: 1, kind: input, shape index: {}]
  %s2 = inlined_call_operand.hbm [shape: f32[8,128], index: 2, kind: input, shape index: {}]
  %s3 = inlined_call_operand.hbm [shape: f32[4,8,128], index: 3, kind: output, shape index: {}]
  %s4 = sld [smem:[#allocation0]]
  $region34: #{tpu_custom_call.1} parent=0
    _
  %s6 = ssub.s32 1, %s4
  %s7 = scalar_select 0, %s6, %s4
  $region1: #{tpu_custom_call.1} parent=0
    #allocation2 [shape = 'u8[8192]{0}', space=vmem, size = 0x2000, scoped, tag = 'input window, operand 0, single buffered']
    #allocation3 [shape = 's32[1]{0}', space=sflag, size = 0x4, scoped, tag = 'scoped memory for tpu_custom_call.1']
    #allocation4 [shape = 's32[1]{0}', space=sflag, size = 0x4, scoped, tag = 'scoped memory for tpu_custom_call.1']
    #allocation5 [shape = 'u8[229376]{0}', space=vmem, size = 0x38000, scoped, tag = 'input window, operand 1, single buffered']
    #allocation6 [shape = 's32[1]{0}', space=sflag, size = 0x4, scoped, tag = 'scoped memory for tpu_custom_call.1']
    #allocation7 [shape = 'u8[4096]{0}', space=vmem, size = 0x1000, scoped, tag = 'input window, operand 2, single buffered']
    #allocation8 [shape = 'u8[16384]{0}', space=vmem, size = 0x4000, scoped, tag = 'output window, operand 0, single buffered']
    %8 = vsyncpa [#allocation3], 0
    %9 = vsyncpa [#allocation6], 0
    %10 = vsyncpa [#allocation4], 0
    // Predicated region
    $region2: #{tpu_custom_call.1} parent=1 // pred_check
      _
    $region3: #{tpu_custom_call.1} parent=1 // pred_check_branch
      %12 = sbr.rel (0) target = $region5
    $region4: #{tpu_custom_call.1} parent=1 // pred_region
      %s14 = ssub.s32 256, 256
      %15 = vsyncadd [#allocation3], %s14
      %s16 = sshll.u32 [#allocation2], 4
      %s17 = int_to_ptr.vmem [resolvable:$true] %s16
      %22 = dma.hbm_to_vmem [thread:$0]  %s0, 256, %s17, [#allocation3], 128, 128, 8
    $region5: #{tpu_custom_call.1} parent=1 // pred_fallthru
      _
    // Predicated region
    $region6: #{tpu_custom_call.1} parent=1 // pred_check
      _
    $region7: #{tpu_custom_call.1} parent=1 // pred_check_branch
      %24 = sbr.rel (0) target = $region9
    $region8: #{tpu_custom_call.1} parent=1 // pred_region
      %s26 = ssub.s32 7168, 7168
      %27 = vsyncadd [#allocation6], %s26
      %s28 = sshll.u32 [#allocation5], 4
      %s29 = int_to_ptr.vmem [resolvable:$true] %s28
      %34 = dma.hbm_to_vmem [thread:$0]  %s1, 7168, %s29, [#allocation6], 64, 64, 4
    $region9: #{tpu_custom_call.1} parent=1 // pred_fallthru
      _
    // Predicated region
    $region10: #{tpu_custom_call.1} parent=1 // pred_check
      _
    $region11: #{tpu_custom_call.1} parent=1 // pred_check_branch
      %36 = sbr.rel (0) target = $region13
    $region12: #{tpu_custom_call.1} parent=1 // pred_region
      %s38 = ssub.s32 128, 128
      %39 = vsyncadd [#allocation6], %s38
      %s41 = sshll.u32 [#allocation7], 4
      %s42 = int_to_ptr.vmem [resolvable:$true] %s41
      %44 = dma.hbm_to_vmem [thread:$0]  %s2, 128, %s42, [#allocation6]
    $region13: #{tpu_custom_call.1} parent=1 // pred_fallthru
      _
    // Predicated region
    $region14: #{tpu_custom_call.1} parent=1 // pred_check
      _
    $region15: #{tpu_custom_call.1} parent=1 // pred_check_branch
      %46 = sbr.rel (0) target = $region17
    $region16: #{tpu_custom_call.1} parent=1 // pred_region
      %47 = dma.done [#allocation3], 256
    $region17: #{tpu_custom_call.1} parent=1 // pred_fallthru
      _
    // Predicated region
    $region18: #{tpu_custom_call.1} parent=1 // pred_check
      _
    $region19: #{tpu_custom_call.1} parent=1 // pred_check_branch
      %49 = sbr.rel (0) target = $region21
    $region20: #{tpu_custom_call.1} parent=1 // pred_region
      %50 = dma.done [#allocation6], 7168
    $region21: #{tpu_custom_call.1} parent=1 // pred_fallthru
      _
    // Predicated region
    $region22: #{tpu_custom_call.1} parent=1 // pred_check
      _
    $region23: #{tpu_custom_call.1} parent=1 // pred_check_branch
      %52 = sbr.rel (0) target = $region25
    $region24: #{tpu_custom_call.1} parent=1 // pred_region
      %53 = dma.done [#allocation6], 128
    $region25: #{tpu_custom_call.1} parent=1 // pred_fallthru
      _
    %v55 = vld [vmem:[#allocation2] sm:$0xff]
    %s56 = scalar_lea.vmem [#allocation2], 8
    %v57 = vld [vmem:[%s56] sm:$0xff]
    %v58 = vpack.c.bf16 %v55, %v55
    %v59 = vld [vmem:[#allocation5] sm:$0xf]
    %v60 = vld [vmem:[#allocation5 + $0x4] sm:$0xf]
    %v61 = vld [vmem:[#allocation5 + $0x8] sm:$0xf]
    %v62 = vld [vmem:[#allocation5 + $0xc] sm:$0xf]
    %v63 = vld [vmem:[#allocation5 + $0x10] sm:$0xf]
    %v64 = vld [vmem:[#allocation5 + $0x14] sm:$0xf]
    %v65 = vld [vmem:[#allocation5 + $0x18] sm:$0xf]
    %v66 = vld [vmem:[#allocation5 + $0x1c] sm:$0xf]
    %v67 = vld [vmem:[#allocation5 + $0x20] sm:$0xf]
    %v68 = vld [vmem:[#allocation5 + $0x24] sm:$0xf]
    %v69 = vld [vmem:[#allocation5 + $0x28] sm:$0xf]
    %v70 = vld [vmem:[#allocation5 + $0x2c] sm:$0xf]
    %v71 = vld [vmem:[#allocation5 + $0x30] sm:$0xf]
    %v72 = vld [vmem:[#allocation5 + $0x34] sm:$0xf]
    %v73 = vld [vmem:[#allocation5 + $0x38] sm:$0xf]
    %v74 = vld [vmem:[#allocation5 + $0x3c] sm:$0xf]
    %v75 = vld [vmem:[#allocation7] sm:$0x1]
    %v76 = vlaneseq
    %v77 = vshrl.u32 %v76, 7
    %v78 = vsub.s32 0, %v77
    %v79 = vrot.slane %v75, %v78
    %v96 = vunpack.c.l.b16 %v59
    %v97 = vunpack.c.l.b16 %v60
    %v98 = vunpack.c.l.b16 %v61
    %v99 = vunpack.c.l.b16 %v62
    %v100 = vunpack.c.l.b16 %v63
    %v101 = vunpack.c.l.b16 %v64
    %v102 = vunpack.c.l.b16 %v65
    %v103 = vunpack.c.l.b16 %v66
    %v104 = vunpack.c.l.b16 %v67
    %v105 = vunpack.c.l.b16 %v68
    %v106 = vunpack.c.l.b16 %v69
    %v107 = vunpack.c.l.b16 %v70
    %v108 = vunpack.c.l.b16 %v71
    %v109 = vunpack.c.l.b16 %v72
    %v110 = vunpack.c.l.b16 %v73
    %v111 = vunpack.c.l.b16 %v74
    %v112 = vpack.c.b16 %v97, %v96
    %v113 = vpack.c.b16 %v99, %v98
    %v114 = vpack.c.b16 %v101, %v100
    %v115 = vpack.c.b16 %v103, %v102
    %v116 = vpack.c.b16 %v105, %v104
    %v117 = vpack.c.b16 %v107, %v106
    %v118 = vpack.c.b16 %v109, %v108
    %v119 = vpack.c.b16 %v111, %v110
    %128 = vmatprep.subr.bf16.mxu0 0
    %129 = vmatpush1.bf16.msra.mxu0 %v119
    %130 = vmatprep.subr.bf16.mxu0 0
    %131 = vmatpush1.bf16.msra.mxu0 %v118
    %132 = vmatprep.subr.bf16.mxu0 0
    %133 = vmatpush1.bf16.msra.mxu0 %v117
    %134 = vmatprep.subr.bf16.mxu0 0
    %135 = vmatpush1.bf16.msra.mxu0 %v116
    %136 = vmatprep.subr.bf16.mxu0 0
    %137 = vmatpush1.bf16.msra.mxu0 %v115
    %138 = vmatprep.subr.bf16.mxu0 0
    %139 = vmatpush1.bf16.msra.mxu0 %v114
    %140 = vmatprep.subr.bf16.mxu0 0
    %141 = vmatpush1.bf16.msra.mxu0 %v113
    %142 = vmatprep.subr.bf16.mxu0 0
    %143 = vmatpush1.bf16.msra.mxu0 %v112
    %144 = vmatprep.subr.bf16.mxu0 0
    %145 = vmatpush2.bf16.msra.mxu0 0
    %146 = vmatprep.subr.bf16.mxu0 0
    %147 = vmatpush2.bf16.msra.mxu0 0
    %148 = vmatprep.subr.bf16.mxu0 0
    %149 = vmatpush2.bf16.msra.mxu0 0
    %150 = vmatprep.subr.bf16.mxu0 0
    %151 = vmatpush2.bf16.msra.mxu0 0
    %152 = vmatprep.subr.bf16.mxu0 0
    %153 = vmatpush2.bf16.msra.mxu0 0
    %154 = vmatprep.subr.bf16.mxu0 0
    %155 = vmatpush2.bf16.msra.mxu0 0
    %156 = vmatprep.subr.bf16.mxu0 0
    %157 = vmatpush2.bf16.msra.mxu0 0
    %158 = vmatprep.subr.bf16.mxu0 0
    %159 = vmatpush2.bf16.msra.mxu0 0
    %160 = vmatprep.mubr.bf16.mxu0 0
    %161 = vmatmul.mubr.bf16.gmra.mxu0 %v58
    %v162 = vpop.f32.mrf.mxu0
    %v163 = vadd.f32 %v79, %v162
    %v164 = vpop.f32.mrf.mxu0
    %v165 = vpop.f32.mrf.mxu0
    %v166 = vpop.f32.mrf.mxu0
    %167 = vdwg.mxu0
    %v168 = vmax.f32 %v163, 0.0
    %v169 = vpack.c.bf16 %v168, %v168
    %s170 = scalar_lea.vmem [#allocation5], 64
    %v171 = vld [vmem:[%s170] sm:$0xf]
    %v172 = vld [vmem:[%s170 + $0x4] sm:$0xf]
    %v173 = vld [vmem:[%s170 + $0x8] sm:$0xf]
    %v174 = vld [vmem:[%s170 + $0xc] sm:$0xf]
    %v175 = vld [vmem:[%s170 + $0x10] sm:$0xf]
    %v176 = vld [vmem:[%s170 + $0x14] sm:$0xf]
    %v177 = vld [vmem:[%s170 + $0x18] sm:$0xf]
    %v178 = vld [vmem:[%s170 + $0x1c] sm:$0xf]
    %v179 = vld [vmem:[%s170 + $0x20] sm:$0xf]
    %v180 = vld [vmem:[%s170 + $0x24] sm:$0xf]
    %v181 = vld [vmem:[%s170 + $0x28] sm:$0xf]
    %v182 = vld [vmem:[%s170 + $0x2c] sm:$0xf]
    %v183 = vld [vmem:[%s170 + $0x30] sm:$0xf]
    %v184 = vld [vmem:[%s170 + $0x34] sm:$0xf]
    %v185 = vld [vmem:[%s170 + $0x38] sm:$0xf]
    %v186 = vld [vmem:[%s170 + $0x3c] sm:$0xf]
    %v187 = vld [vmem:[#allocation7 + $0x1] sm:$0x1]
    %v188 = vlaneseq
    %v189 = vshrl.u32 %v188, 7
    %v190 = vsub.s32 0, %v189
    %v191 = vrot.slane %v187, %v190
    %v208 = vunpack.c.l.b16 %v171
    %v209 = vunpack.c.l.b16 %v172
    %v210 = vunpack.c.l.b16 %v173
    %v211 = vunpack.c.l.b16 %v174
    %v212 = vunpack.c.l.b16 %v175
    %v213 = vunpack.c.l.b16 %v176
    %v214 = vunpack.c.l.b16 %v177
    %v215 = vunpack.c.l.b16 %v178
    %v216 = vunpack.c.l.b16 %v179
    %v217 = vunpack.c.l.b16 %v180
    %v218 = vunpack.c.l.b16 %v181
    %v219 = vunpack.c.l.b16 %v182
    %v220 = vunpack.c.l.b16 %v183
    %v221 = vunpack.c.l.b16 %v184
    %v222 = vunpack.c.l.b16 %v185
    %v223 = vunpack.c.l.b16 %v186
    %v224 = vpack.c.b16 %v209, %v208
    %v225 = vpack.c.b16 %v211, %v210
    %v226 = vpack.c.b16 %v213, %v212
    %v227 = vpack.c.b16 %v215, %v214
    %v228 = vpack.c.b16 %v217, %v216
    %v229 = vpack.c.b16 %v219, %v218
    %v230 = vpack.c.b16 %v221, %v220
    %v231 = vpack.c.b16 %v223, %v222
    %240 = vmatprep.subr.bf16.mxu0 0
    %241 = vmatpush1.bf16.msra.mxu0 %v231
    %242 = vmatprep.subr.bf16.mxu0 0
    %243 = vmatpush1.bf16.msra.mxu0 %v230
    %244 = vmatprep.subr.bf16.mxu0 0
    %245 = vmatpush1.bf16.msra.mxu0 %v229
    %246 = vmatprep.subr.bf16.mxu0 0
    %247 = vmatpush1.bf16.msra.mxu0 %v228
    %248 = vmatprep.subr.bf16.mxu0 0
    %249 = vmatpush1.bf16.msra.mxu0 %v227
    %250 = vmatprep.subr.bf16.mxu0 0
    %251 = vmatpush1.bf16.msra.mxu0 %v226
    %252 = vmatprep.subr.bf16.mxu0 0
    %253 = vmatpush1.bf16.msra.mxu0 %v225
    %254 = vmatprep.subr.bf16.mxu0 0
    %255 = vmatpush1.bf16.msra.mxu0 %v224
    %256 = vmatprep.subr.bf16.mxu0 0
    %257 = vmatpush2.bf16.msra.mxu0 0
    %258 = vmatprep.subr.bf16.mxu0 0
    %259 = vmatpush2.bf16.msra.mxu0 0
    %260 = vmatprep.subr.bf16.mxu0 0
    %261 = vmatpush2.bf16.msra.mxu0 0
    %262 = vmatprep.subr.bf16.mxu0 0
    %263 = vmatpush2.bf16.msra.mxu0 0
    %264 = vmatprep.subr.bf16.mxu0 0
    %265 = vmatpush2.bf16.msra.mxu0 0
    %266 = vmatprep.subr.bf16.mxu0 0
    %267 = vmatpush2.bf16.msra.mxu0 0
    %268 = vmatprep.subr.bf16.mxu0 0
    %269 = vmatpush2.bf16.msra.mxu0 0
    %270 = vmatprep.subr.bf16.mxu0 0
    %271 = vmatpush2.bf16.msra.mxu0 0
    %272 = vmatprep.mubr.bf16.mxu0 0
    %273 = vmatmul.mubr.bf16.gmra.mxu0 %v169
    %v274 = vpop.f32.mrf.mxu0
    %v275 = vadd.f32 %v191, %v274
    %v276 = vpop.f32.mrf.mxu0
    %v277 = vpop.f32.mrf.mxu0
    %v278 = vpop.f32.mrf.mxu0
    %279 = vdwg.mxu0
    %v280 = vmax.f32 %v275, 0.0
    %v281 = vpack.c.bf16 %v280, %v280
    %s282 = scalar_lea.vmem [#allocation5], 128
    %v283 = vld [vmem:[%s282] sm:$0xf]
    %v284 = vld [vmem:[%s282 + $0x4] sm:$0xf]
    %v285 = vld [vmem:[%s282 + $0x8] sm:$0xf]
    %v286 = vld [vmem:[%s282 + $0xc] sm:$0xf]
    %v287 = vld [vmem:[%s282 + $0x10] sm:$0xf]
    %v288 = vld [vmem:[%s282 + $0x14] sm:$0xf]
    %v289 = vld [vmem:[%s282 + $0x18] sm:$0xf]
    %v290 = vld [vmem:[%s282 + $0x1c] sm:$0xf]
    %v291 = vld [vmem:[%s282 + $0x20] sm:$0xf]
    %v292 = vld [vmem:[%s282 + $0x24] sm:$0xf]
    %v293 = vld [vmem:[%s282 + $0x28] sm:$0xf]
    %v294 = vld [vmem:[%s282 + $0x2c] sm:$0xf]
    %v295 = vld [vmem:[%s282 + $0x30] sm:$0xf]
    %v296 = vld [vmem:[%s282 + $0x34] sm:$0xf]
    %v297 = vld [vmem:[%s282 + $0x38] sm:$0xf]
    %v298 = vld [vmem:[%s282 + $0x3c] sm:$0xf]
    %v299 = vld [vmem:[#allocation7 + $0x2] sm:$0x1]
    %v300 = vlaneseq
    %v301 = vshrl.u32 %v300, 7
    %v302 = vsub.s32 0, %v301
    %v303 = vrot.slane %v299, %v302
    %v320 = vunpack.c.l.b16 %v283
    %v321 = vunpack.c.l.b16 %v284
    %v322 = vunpack.c.l.b16 %v285
    %v323 = vunpack.c.l.b16 %v286
    %v324 = vunpack.c.l.b16 %v287
    %v325 = vunpack.c.l.b16 %v288
    %v326 = vunpack.c.l.b16 %v289
    %v327 = vunpack.c.l.b16 %v290
    %v328 = vunpack.c.l.b16 %v291
    %v329 = vunpack.c.l.b16 %v292
    %v330 = vunpack.c.l.b16 %v293
    %v331 = vunpack.c.l.b16 %v294
    %v332 = vunpack.c.l.b16 %v295
    %v333 = vunpack.c.l.b16 %v296
    %v334 = vunpack.c.l.b16 %v297
    %v335 = vunpack.c.l.b16 %v298
    %v336 = vpack.c.b16 %v321, %v320
    %v337 = vpack.c.b16 %v323, %v322
    %v338 = vpack.c.b16 %v325, %v324
    %v339 = vpack.c.b16 %v327, %v326
    %v340 = vpack.c.b16 %v329, %v328
    %v341 = vpack.c.b16 %v331, %v330
    %v342 = vpack.c.b16 %v333, %v332
    %v343 = vpack.c.b16 %v335, %v334
    %352 = vmatprep.subr.bf16.mxu0 0
    %353 = vmatpush1.bf16.msra.mxu0 %v343
    %354 = vmatprep.subr.bf16.mxu0 0
    %355 = vmatpush1.bf16.msra.mxu0 %v342
    %356 = vmatprep.subr.bf16.mxu0 0
    %357 = vmatpush1.bf16.msra.mxu0 %v341
    %358 = vmatprep.subr.bf16.mxu0 0
    %359 = vmatpush1.bf16.msra.mxu0 %v340
    %360 = vmatprep.subr.bf16.mxu0 0
    %361 = vmatpush1.bf16.msra.mxu0 %v339
    %362 = vmatprep.subr.bf16.mxu0 0
    %363 = vmatpush1.bf16.msra.mxu0 %v338
    %364 = vmatprep.subr.bf16.mxu0 0
    %365 = vmatpush1.bf16.msra.mxu0 %v337
    %366 = vmatprep.subr.bf16.mxu0 0
    %367 = vmatpush1.bf16.msra.mxu0 %v336
    %368 = vmatprep.subr.bf16.mxu0 0
    %369 = vmatpush2.bf16.msra.mxu0 0
    %370 = vmatprep.subr.bf16.mxu0 0
    %371 = vmatpush2.bf16.msra.mxu0 0
    %372 = vmatprep.subr.bf16.mxu0 0
    %373 = vmatpush2.bf16.msra.mxu0 0
    %374 = vmatprep.subr.bf16.mxu0 0
    %375 = vmatpush2.bf16.msra.mxu0 0
    %376 = vmatprep.subr.bf16.mxu0 0
    %377 = vmatpush2.bf16.msra.mxu0 0
    %378 = vmatprep.subr.bf16.mxu0 0
    %379 = vmatpush2.bf16.msra.mxu0 0
    %380 = vmatprep.subr.bf16.mxu0 0
    %381 = vmatpush2.bf16.msra.mxu0 0
    %382 = vmatprep.subr.bf16.mxu0 0
    %383 = vmatpush2.bf16.msra.mxu0 0
    %384 = vmatprep.mubr.bf16.mxu0 0
    %385 = vmatmul.mubr.bf16.gmra.mxu0 %v281
    %v386 = vpop.f32.mrf.mxu0
    %v387 = vadd.f32 %v303, %v386
    %v388 = vpop.f32.mrf.mxu0
    %v389 = vpop.f32.mrf.mxu0
    %v390 = vpop.f32.mrf.mxu0
    %391 = vdwg.mxu0
    %s392 = scalar_lea.vmem [#allocation5], 192
    %v393 = vld [vmem:[%s392] sm:$0xf]
    %v394 = vld [vmem:[%s392 + $0x4] sm:$0xf]
    %v395 = vld [vmem:[%s392 + $0x8] sm:$0xf]
    %v396 = vld [vmem:[%s392 + $0xc] sm:$0xf]
    %v397 = vld [vmem:[%s392 + $0x10] sm:$0xf]
    %v398 = vld [vmem:[%s392 + $0x14] sm:$0xf]
    %v399 = vld [vmem:[%s392 + $0x18] sm:$0xf]
    %v400 = vld [vmem:[%s392 + $0x1c] sm:$0xf]
    %v401 = vld [vmem:[%s392 + $0x20] sm:$0xf]
    %v402 = vld [vmem:[%s392 + $0x24] sm:$0xf]
    %v403 = vld [vmem:[%s392 + $0x28] sm:$0xf]
    %v404 = vld [vmem:[%s392 + $0x2c] sm:$0xf]
    %v405 = vld [vmem:[%s392 + $0x30] sm:$0xf]
    %v406 = vld [vmem:[%s392 + $0x34] sm:$0xf]
    %v407 = vld [vmem:[%s392 + $0x38] sm:$0xf]
    %v408 = vld [vmem:[%s392 + $0x3c] sm:$0xf]
    %v409 = vld [vmem:[#allocation7 + $0x3] sm:$0x1]
    %v410 = vlaneseq
    %v411 = vshrl.u32 %v410, 7
    %v412 = vsub.s32 0, %v411
    %v413 = vrot.slane %v409, %v412
    %v430 = vunpack.c.l.b16 %v393
    %v431 = vunpack.c.l.b16 %v394
    %v432 = vunpack.c.l.b16 %v395
    %v433 = vunpack.c.l.b16 %v396
    %v434 = vunpack.c.l.b16 %v397
    %v435 = vunpack.c.l.b16 %v398
    %v436 = vunpack.c.l.b16 %v399
    %v437 = vunpack.c.l.b16 %v400
    %v438 = vunpack.c.l.b16 %v401
    %v439 = vunpack.c.l.b16 %v402
    %v440 = vunpack.c.l.b16 %v403
    %v441 = vunpack.c.l.b16 %v404
    %v442 = vunpack.c.l.b16 %v405
    %v443 = vunpack.c.l.b16 %v406
    %v444 = vunpack.c.l.b16 %v407
    %v445 = vunpack.c.l.b16 %v408
    %v446 = vpack.c.b16 %v431, %v430
    %v447 = vpack.c.b16 %v433, %v432
    %v448 = vpack.c.b16 %v435, %v434
    %v449 = vpack.c.b16 %v437, %v436
    %v450 = vpack.c.b16 %v439, %v438
    %v451 = vpack.c.b16 %v441, %v440
    %v452 = vpack.c.b16 %v443, %v442
    %v453 = vpack.c.b16 %v445, %v444
    %462 = vmatprep.subr.bf16.mxu0 0
    %463 = vmatpush1.bf16.msra.mxu0 %v453
    %464 = vmatprep.subr.bf16.mxu0 0
    %465 = vmatpush1.bf16.msra.mxu0 %v452
    %466 = vmatprep.subr.bf16.mxu0 0
    %467 = vmatpush1.bf16.msra.mxu0 %v451
    %468 = vmatprep.subr.bf16.mxu0 0
    %469 = vmatpush1.bf16.msra.mxu0 %v450
    %470 = vmatprep.subr.bf16.mxu0 0
    %471 = vmatpush1.bf16.msra.mxu0 %v449
    %472 = vmatprep.subr.bf16.mxu0 0
    %473 = vmatpush1.bf16.msra.mxu0 %v448
    %474 = vmatprep.subr.bf16.mxu0 0
    %475 = vmatpush1.bf16.msra.mxu0 %v447
    %476 = vmatprep.subr.bf16.mxu0 0
    %477 = vmatpush1.bf16.msra.mxu0 %v446
    %478 = vmatprep.subr.bf16.mxu0 0
    %479 = vmatpush2.bf16.msra.mxu0 0
    %480 = vmatprep.subr.bf16.mxu0 0
    %481 = vmatpush2.bf16.msra.mxu0 0
    %482 = vmatprep.subr.bf16.mxu0 0
    %483 = vmatpush2.bf16.msra.mxu0 0
    %484 = vmatprep.subr.bf16.mxu0 0
    %485 = vmatpush2.bf16.msra.mxu0 0
    %486 = vmatprep.subr.bf16.mxu0 0
    %487 = vmatpush2.bf16.msra.mxu0 0
    %488 = vmatprep.subr.bf16.mxu0 0
    %489 = vmatpush2.bf16.msra.mxu0 0
    %490 = vmatprep.subr.bf16.mxu0 0
    %491 = vmatpush2.bf16.msra.mxu0 0
    %492 = vmatprep.subr.bf16.mxu0 0
    %493 = vmatpush2.bf16.msra.mxu0 0
    %494 = vmatprep.mubr.bf16.mxu0 0
    %495 = vmatmul.mubr.bf16.gmra.mxu0 %v281
    %v496 = vpop.f32.mrf.mxu0
    %v497 = vadd.f32 %v413, %v496
    %v498 = vpop.f32.mrf.mxu0
    %v499 = vpop.f32.mrf.mxu0
    %v500 = vpop.f32.mrf.mxu0
    %501 = vdwg.mxu0
    %v502 = vmul.f32 %v497, 0.5
    %v503 = vmul.f32 %v502, 1.442695
    %v504 = vpow.pop %v503
    %v505 = vmul.f32 %v57, %v504
    %v506 = vadd.f32 %v387, %v505
    %v507 = vpack.c.bf16 %v506, %v506
    %s508 = scalar_lea.vmem [#allocation5], 256
    %v509 = vld [vmem:[%s508] sm:$0xf]
    %v510 = vld [vmem:[%s508 + $0x4] sm:$0xf]
    %v511 = vld [vmem:[%s508 + $0x8] sm:$0xf]
    %v512 = vld [vmem:[%s508 + $0xc] sm:$0xf]
    %v513 = vld [vmem:[%s508 + $0x10] sm:$0xf]
    %v514 = vld [vmem:[%s508 + $0x14] sm:$0xf]
    %v515 = vld [vmem:[%s508 + $0x18] sm:$0xf]
    %v516 = vld [vmem:[%s508 + $0x1c] sm:$0xf]
    %v517 = vld [vmem:[%s508 + $0x20] sm:$0xf]
    %v518 = vld [vmem:[%s508 + $0x24] sm:$0xf]
    %v519 = vld [vmem:[%s508 + $0x28] sm:$0xf]
    %v520 = vld [vmem:[%s508 + $0x2c] sm:$0xf]
    %v521 = vld [vmem:[%s508 + $0x30] sm:$0xf]
    %v522 = vld [vmem:[%s508 + $0x34] sm:$0xf]
    %v523 = vld [vmem:[%s508 + $0x38] sm:$0xf]
    %v524 = vld [vmem:[%s508 + $0x3c] sm:$0xf]
    %v525 = vld [vmem:[#allocation7 + $0x4] sm:$0x1]
    %v526 = vlaneseq
    %v527 = vshrl.u32 %v526, 7
    %v528 = vsub.s32 0, %v527
    %v529 = vrot.slane %v525, %v528
    %v546 = vunpack.c.l.b16 %v509
    %v547 = vunpack.c.l.b16 %v510
    %v548 = vunpack.c.l.b16 %v511
    %v549 = vunpack.c.l.b16 %v512
    %v550 = vunpack.c.l.b16 %v513
    %v551 = vunpack.c.l.b16 %v514
    %v552 = vunpack.c.l.b16 %v515
    %v553 = vunpack.c.l.b16 %v516
    %v554 = vunpack.c.l.b16 %v517
    %v555 = vunpack.c.l.b16 %v518
    %v556 = vunpack.c.l.b16 %v519
    %v557 = vunpack.c.l.b16 %v520
    %v558 = vunpack.c.l.b16 %v521
    %v559 = vunpack.c.l.b16 %v522
    %v560 = vunpack.c.l.b16 %v523
    %v561 = vunpack.c.l.b16 %v524
    %v562 = vpack.c.b16 %v547, %v546
    %v563 = vpack.c.b16 %v549, %v548
    %v564 = vpack.c.b16 %v551, %v550
    %v565 = vpack.c.b16 %v553, %v552
    %v566 = vpack.c.b16 %v555, %v554
    %v567 = vpack.c.b16 %v557, %v556
    %v568 = vpack.c.b16 %v559, %v558
    %v569 = vpack.c.b16 %v561, %v560
    %578 = vmatprep.subr.bf16.mxu0 0
    %579 = vmatpush1.bf16.msra.mxu0 %v569
    %580 = vmatprep.subr.bf16.mxu0 0
    %581 = vmatpush1.bf16.msra.mxu0 %v568
    %582 = vmatprep.subr.bf16.mxu0 0
    %583 = vmatpush1.bf16.msra.mxu0 %v567
    %584 = vmatprep.subr.bf16.mxu0 0
    %585 = vmatpush1.bf16.msra.mxu0 %v566
    %586 = vmatprep.subr.bf16.mxu0 0
    %587 = vmatpush1.bf16.msra.mxu0 %v565
    %588 = vmatprep.subr.bf16.mxu0 0
    %589 = vmatpush1.bf16.msra.mxu0 %v564
    %590 = vmatprep.subr.bf16.mxu0 0
    %591 = vmatpush1.bf16.msra.mxu0 %v563
    %592 = vmatprep.subr.bf16.mxu0 0
    %593 = vmatpush1.bf16.msra.mxu0 %v562
    %594 = vmatprep.subr.bf16.mxu0 0
    %595 = vmatpush2.bf16.msra.mxu0 0
    %596 = vmatprep.subr.bf16.mxu0 0
    %597 = vmatpush2.bf16.msra.mxu0 0
    %598 = vmatprep.subr.bf16.mxu0 0
    %599 = vmatpush2.bf16.msra.mxu0 0
    %600 = vmatprep.subr.bf16.mxu0 0
    %601 = vmatpush2.bf16.msra.mxu0 0
    %602 = vmatprep.subr.bf16.mxu0 0
    %603 = vmatpush2.bf16.msra.mxu0 0
    %604 = vmatprep.subr.bf16.mxu0 0
    %605 = vmatpush2.bf16.msra.mxu0 0
    %606 = vmatprep.subr.bf16.mxu0 0
    %607 = vmatpush2.bf16.msra.mxu0 0
    %608 = vmatprep.subr.bf16.mxu0 0
    %609 = vmatpush2.bf16.msra.mxu0 0
    %610 = vmatprep.mubr.bf16.mxu0 0
    %611 = vmatmul.mubr.bf16.gmra.mxu0 %v507
    %v612 = vpop.f32.mrf.mxu0
    %v613 = vadd.f32 %v529, %v612
    %v614 = vpop.f32.mrf.mxu0
    %v615 = vpop.f32.mrf.mxu0
    %v616 = vpop.f32.mrf.mxu0
    %617 = vdwg.mxu0
    %v618 = vmax.f32 %v613, 0.0
    %v619 = vpack.c.bf16 %v618, %v618
    %s620 = scalar_lea.vmem [#allocation5], 320
    %v621 = vld [vmem:[%s620] sm:$0xf]
    %v622 = vld [vmem:[%s620 + $0x4] sm:$0xf]
    %v623 = vld [vmem:[%s620 + $0x8] sm:$0xf]
    %v624 = vld [vmem:[%s620 + $0xc] sm:$0xf]
    %v625 = vld [vmem:[%s620 + $0x10] sm:$0xf]
    %v626 = vld [vmem:[%s620 + $0x14] sm:$0xf]
    %v627 = vld [vmem:[%s620 + $0x18] sm:$0xf]
    %v628 = vld [vmem:[%s620 + $0x1c] sm:$0xf]
    %v629 = vld [vmem:[%s620 + $0x20] sm:$0xf]
    %v630 = vld [vmem:[%s620 + $0x24] sm:$0xf]
    %v631 = vld [vmem:[%s620 + $0x28] sm:$0xf]
    %v632 = vld [vmem:[%s620 + $0x2c] sm:$0xf]
    %v633 = vld [vmem:[%s620 + $0x30] sm:$0xf]
    %v634 = vld [vmem:[%s620 + $0x34] sm:$0xf]
    %v635 = vld [vmem:[%s620 + $0x38] sm:$0xf]
    %v636 = vld [vmem:[%s620 + $0x3c] sm:$0xf]
    %v637 = vld [vmem:[#allocation7 + $0x5] sm:$0x1]
    %v638 = vlaneseq
    %v639 = vshrl.u32 %v638, 7
    %v640 = vsub.s32 0, %v639
    %v641 = vrot.slane %v637, %v640
    %v658 = vunpack.c.l.b16 %v621
    %v659 = vunpack.c.l.b16 %v622
    %v660 = vunpack.c.l.b16 %v623
    %v661 = vunpack.c.l.b16 %v624
    %v662 = vunpack.c.l.b16 %v625
    %v663 = vunpack.c.l.b16 %v626
    %v664 = vunpack.c.l.b16 %v627
    %v665 = vunpack.c.l.b16 %v628
    %v666 = vunpack.c.l.b16 %v629
    %v667 = vunpack.c.l.b16 %v630
    %v668 = vunpack.c.l.b16 %v631
    %v669 = vunpack.c.l.b16 %v632
    %v670 = vunpack.c.l.b16 %v633
    %v671 = vunpack.c.l.b16 %v634
    %v672 = vunpack.c.l.b16 %v635
    %v673 = vunpack.c.l.b16 %v636
    %v674 = vpack.c.b16 %v659, %v658
    %v675 = vpack.c.b16 %v661, %v660
    %v676 = vpack.c.b16 %v663, %v662
    %v677 = vpack.c.b16 %v665, %v664
    %v678 = vpack.c.b16 %v667, %v666
    %v679 = vpack.c.b16 %v669, %v668
    %v680 = vpack.c.b16 %v671, %v670
    %v681 = vpack.c.b16 %v673, %v672
    %690 = vmatprep.subr.bf16.mxu0 0
    %691 = vmatpush1.bf16.msra.mxu0 %v681
    %692 = vmatprep.subr.bf16.mxu0 0
    %693 = vmatpush1.bf16.msra.mxu0 %v680
    %694 = vmatprep.subr.bf16.mxu0 0
    %695 = vmatpush1.bf16.msra.mxu0 %v679
    %696 = vmatprep.subr.bf16.mxu0 0
    %697 = vmatpush1.bf16.msra.mxu0 %v678
    %698 = vmatprep.subr.bf16.mxu0 0
    %699 = vmatpush1.bf16.msra.mxu0 %v677
    %700 = vmatprep.subr.bf16.mxu0 0
    %701 = vmatpush1.bf16.msra.mxu0 %v676
    %702 = vmatprep.subr.bf16.mxu0 0
    %703 = vmatpush1.bf16.msra.mxu0 %v675
    %704 = vmatprep.subr.bf16.mxu0 0
    %705 = vmatpush1.bf16.msra.mxu0 %v674
    %706 = vmatprep.subr.bf16.mxu0 0
    %707 = vmatpush2.bf16.msra.mxu0 0
    %708 = vmatprep.subr.bf16.mxu0 0
    %709 = vmatpush2.bf16.msra.mxu0 0
    %710 = vmatprep.subr.bf16.mxu0 0
    %711 = vmatpush2.bf16.msra.mxu0 0
    %712 = vmatprep.subr.bf16.mxu0 0
    %713 = vmatpush2.bf16.msra.mxu0 0
    %714 = vmatprep.subr.bf16.mxu0 0
    %715 = vmatpush2.bf16.msra.mxu0 0
    %716 = vmatprep.subr.bf16.mxu0 0
    %717 = vmatpush2.bf16.msra.mxu0 0
    %718 = vmatprep.subr.bf16.mxu0 0
    %719 = vmatpush2.bf16.msra.mxu0 0
    %720 = vmatprep.subr.bf16.mxu0 0
    %721 = vmatpush2.bf16.msra.mxu0 0
    %722 = vmatprep.mubr.bf16.mxu0 0
    %723 = vmatmul.mubr.bf16.gmra.mxu0 %v619
    %v724 = vpop.f32.mrf.mxu0
    %v725 = vadd.f32 %v641, %v724
    %v726 = vpop.f32.mrf.mxu0
    %v727 = vpop.f32.mrf.mxu0
    %v728 = vpop.f32.mrf.mxu0
    %729 = vdwg.mxu0
    %v730 = vmax.f32 %v725, 0.0
    %v731 = vpack.c.bf16 %v730, %v730
    %s732 = scalar_lea.vmem [#allocation5], 384
    %v733 = vld [vmem:[%s732] sm:$0xf]
    %v734 = vld [vmem:[%s732 + $0x4] sm:$0xf]
    %v735 = vld [vmem:[%s732 + $0x8] sm:$0xf]
    %v736 = vld [vmem:[%s732 + $0xc] sm:$0xf]
    %v737 = vld [vmem:[%s732 + $0x10] sm:$0xf]
    %v738 = vld [vmem:[%s732 + $0x14] sm:$0xf]
    %v739 = vld [vmem:[%s732 + $0x18] sm:$0xf]
    %v740 = vld [vmem:[%s732 + $0x1c] sm:$0xf]
    %v741 = vld [vmem:[%s732 + $0x20] sm:$0xf]
    %v742 = vld [vmem:[%s732 + $0x24] sm:$0xf]
    %v743 = vld [vmem:[%s732 + $0x28] sm:$0xf]
    %v744 = vld [vmem:[%s732 + $0x2c] sm:$0xf]
    %v745 = vld [vmem:[%s732 + $0x30] sm:$0xf]
    %v746 = vld [vmem:[%s732 + $0x34] sm:$0xf]
    %v747 = vld [vmem:[%s732 + $0x38] sm:$0xf]
    %v748 = vld [vmem:[%s732 + $0x3c] sm:$0xf]
    %v749 = vld [vmem:[#allocation7 + $0x6] sm:$0x1]
    %v750 = vlaneseq
    %v751 = vshrl.u32 %v750, 7
    %v752 = vsub.s32 0, %v751
    %v753 = vrot.slane %v749, %v752
    %v770 = vunpack.c.l.b16 %v733
    %v771 = vunpack.c.l.b16 %v734
    %v772 = vunpack.c.l.b16 %v735
    %v773 = vunpack.c.l.b16 %v736
    %v774 = vunpack.c.l.b16 %v737
    %v775 = vunpack.c.l.b16 %v738
    %v776 = vunpack.c.l.b16 %v739
    %v777 = vunpack.c.l.b16 %v740
    %v778 = vunpack.c.l.b16 %v741
    %v779 = vunpack.c.l.b16 %v742
    %v780 = vunpack.c.l.b16 %v743
    %v781 = vunpack.c.l.b16 %v744
    %v782 = vunpack.c.l.b16 %v745
    %v783 = vunpack.c.l.b16 %v746
    %v784 = vunpack.c.l.b16 %v747
    %v785 = vunpack.c.l.b16 %v748
    %v786 = vpack.c.b16 %v771, %v770
    %v787 = vpack.c.b16 %v773, %v772
    %v788 = vpack.c.b16 %v775, %v774
    %v789 = vpack.c.b16 %v777, %v776
    %v790 = vpack.c.b16 %v779, %v778
    %v791 = vpack.c.b16 %v781, %v780
    %v792 = vpack.c.b16 %v783, %v782
    %v793 = vpack.c.b16 %v785, %v784
    %802 = vmatprep.subr.bf16.mxu0 0
    %803 = vmatpush1.bf16.msra.mxu0 %v793
    %804 = vmatprep.subr.bf16.mxu0 0
    %805 = vmatpush1.bf16.msra.mxu0 %v792
    %806 = vmatprep.subr.bf16.mxu0 0
    %807 = vmatpush1.bf16.msra.mxu0 %v791
    %808 = vmatprep.subr.bf16.mxu0 0
    %809 = vmatpush1.bf16.msra.mxu0 %v790
    %810 = vmatprep.subr.bf16.mxu0 0
    %811 = vmatpush1.bf16.msra.mxu0 %v789
    %812 = vmatprep.subr.bf16.mxu0 0
    %813 = vmatpush1.bf16.msra.mxu0 %v788
    %814 = vmatprep.subr.bf16.mxu0 0
    %815 = vmatpush1.bf16.msra.mxu0 %v787
    %816 = vmatprep.subr.bf16.mxu0 0
    %817 = vmatpush1.bf16.msra.mxu0 %v786
    %818 = vmatprep.subr.bf16.mxu0 0
    %819 = vmatpush2.bf16.msra.mxu0 0
    %820 = vmatprep.subr.bf16.mxu0 0
    %821 = vmatpush2.bf16.msra.mxu0 0
    %822 = vmatprep.subr.bf16.mxu0 0
    %823 = vmatpush2.bf16.msra.mxu0 0
    %824 = vmatprep.subr.bf16.mxu0 0
    %825 = vmatpush2.bf16.msra.mxu0 0
    %826 = vmatprep.subr.bf16.mxu0 0
    %827 = vmatpush2.bf16.msra.mxu0 0
    %828 = vmatprep.subr.bf16.mxu0 0
    %829 = vmatpush2.bf16.msra.mxu0 0
    %830 = vmatprep.subr.bf16.mxu0 0
    %831 = vmatpush2.bf16.msra.mxu0 0
    %832 = vmatprep.subr.bf16.mxu0 0
    %833 = vmatpush2.bf16.msra.mxu0 0
    %834 = vmatprep.mubr.bf16.mxu0 0
    %835 = vmatmul.mubr.bf16.gmra.mxu0 %v731
    %v836 = vpop.f32.mrf.mxu0
    %v837 = vadd.f32 %v753, %v836
    %v838 = vpop.f32.mrf.mxu0
    %v839 = vpop.f32.mrf.mxu0
    %v840 = vpop.f32.mrf.mxu0
    %841 = vdwg.mxu0
    %842 = vst [vmem:[#allocation8] sm:$0xff] %v837
    %s843 = scalar_lea.vmem [#allocation8], 8
    %844 = vst [vmem:[%s843] sm:$0xff] %v506
    %s845 = scalar_lea.vmem [#allocation8], 16
    %846 = vst [vmem:[%s845] sm:$0xff] %v387
    %s847 = scalar_lea.vmem [#allocation8], 24
    %848 = vst [vmem:[%s847] sm:$0xff] %v497
    // Predicated region
    $region26: #{tpu_custom_call.1} parent=1 // pred_check
      _
    $region27: #{tpu_custom_call.1} parent=1 // pred_check_branch
      %850 = sbr.rel (0) target = $region29
    $region28: #{tpu_custom_call.1} parent=1 // pred_region
      %s852 = ssub.s32 512, 512
      %853 = vsyncadd [#allocation4], %s852
      %s854 = sshll.u32 [#allocation8], 4
      %s855 = int_to_ptr.vmem [resolvable:$true] %s854
      %860 = dma.vmem_to_hbm [thread:$0]  %s855, 512, %s3, [#allocation4], 128, 128, 8
    $region29: #{tpu_custom_call.1} parent=1 // pred_fallthru
      _
    // Predicated region
    $region30: #{tpu_custom_call.1} parent=1 // pred_check
      _
    $region31: #{tpu_custom_call.1} parent=1 // pred_check_branch
      %862 = sbr.rel (0) target = $region33
    $region32: #{tpu_custom_call.1} parent=1 // pred_region
      %863 = dma.done [#allocation4], 512
    $region33: #{tpu_custom_call.1} parent=1 // pred_fallthru
      _
    %864 = vsyncpa [#allocation3], 1
    %865 = vsyncpa [#allocation6], 1
    %866 = vsyncpa [#allocation4], 1

</llo_original>
